<compile_context>
chip_gen: v6e
topology: v6e:2x2x1
jax: 0.10.0
libtpu: 0.0.40
codegen_flags: <defaults>
</compile_context>

<pallas_src>
import functools

import jax
import jax.numpy as jnp
from jax.experimental import pallas as pl
from jax.experimental.pallas import tpu as pltpu


def _round_up(n, m):
    return ((n + m - 1) // m) * m


def _mlp_kernel(*refs, num_layers):
    """Fused MLP kernel.

    refs layout: (x_ref, w0, b0, w1, b1, ..., w_{L-1}, b_{L-1}, out_ref)
    x/w refs are bf16, b refs are f32, out ref is f32.
    ReLU after every layer except the last.
    """
    x_ref = refs[0]
    out_ref = refs[-1]
    param_refs = refs[1:-1]

    h = x_ref[...]  # bf16 activations feed the MXU directly.
    for layer in range(num_layers):
        w = param_refs[2 * layer][...]       # bf16
        b = param_refs[2 * layer + 1][...]   # f32
        acc = jnp.dot(h, w, preferred_element_type=jnp.float32) + b
        if layer != num_layers - 1:
            acc = jnp.maximum(acc, 0.0)       # f32 VPU math (v5e-safe)
            h = acc.astype(jnp.bfloat16)      # back to bf16 for next MXU pass
        else:
            out_ref[...] = acc.astype(out_ref.dtype)


def _pad_params_lane_dense(weights, biases, lane=128):
    """Zero-pad hidden feature dims to multiples of `lane`.

    Input latent dim and final pose dim are left unpadded (they touch HBM);
    only the internal hidden widths are lane-densified. Padded bias columns
    are zero so padded lanes stay exactly 0 through ReLU.
    """
    num_layers = len(weights)
    pw, pb = [], []
    prev_in = weights[0].shape[0]  # latent_dim, not padded
    for i, (w, b) in enumerate(zip(weights, biases)):
        d_in, d_out = w.shape
        pad_in = prev_in
        pad_out = d_out if i == num_layers - 1 else _round_up(d_out, lane)
        w_p = jnp.zeros((pad_in, pad_out), w.dtype).at[:d_in, :d_out].set(w)
        b_p = jnp.zeros((1, pad_out), b.dtype).at[:, :d_out].set(
            jnp.reshape(b, (1, d_out)))
        pw.append(w_p)
        pb.append(b_p)
        prev_in = pad_out
    return pw, pb


def generator_forward(x, weights, biases, *, block_batch=512):
    """Run the fused Generator MLP as a single pipelined Pallas call.

    x:       (batch, latent_dim) float32
    weights: list of (in_dim, out_dim) float32 arrays
    biases:  list of (1, out_dim) float32 arrays
    returns: (batch, pose_dim) float32
    """
    num_layers = len(weights)
    batch, latent_dim = x.shape
    pose_dim = weights[-1].shape[1]

    # Lane-dense hidden dims; bf16 MXU operands.
    pw, pb = _pad_params_lane_dense(weights, biases)
    pw = [w.astype(jnp.bfloat16) for w in pw]
    pb = [b.astype(jnp.float32) for b in pb]

    # Batch tiling: big tiles amortize per-grid-step overhead; clamp for tiny
    # batches. Pad batch so the tile divides it exactly.
    tb = min(block_batch, _round_up(batch, 8))
    padded_batch = _round_up(batch, tb)
    x_in = x.astype(jnp.bfloat16)
    if padded_batch != batch:
        x_in = jnp.pad(x_in, ((0, padded_batch - batch), (0, 0)))
    grid = (padded_batch // tb,)

    # Interleave weights and biases as kernel inputs.
    params = []
    param_specs = []
    for w, b in zip(pw, pb):
        params.append(w)
        param_specs.append(pl.BlockSpec(w.shape, lambda i: (0, 0)))  # resident
        params.append(b)
        param_specs.append(pl.BlockSpec(b.shape, lambda i: (0, 0)))  # resident

    kernel = functools.partial(_mlp_kernel, num_layers=num_layers)

    out = pl.pallas_call(
        kernel,
        out_shape=jax.ShapeDtypeStruct((padded_batch, pose_dim), jnp.float32),
        grid=grid,
        in_specs=[pl.BlockSpec((tb, latent_dim), lambda i: (i, 0))] + param_specs,
        out_specs=pl.BlockSpec((tb, pose_dim), lambda i: (i, 0)),
        compiler_params=pltpu.CompilerParams(
            dimension_semantics=("parallel",)),
    )(x_in, *params)

    return out[:batch]


def init_generator_params(key, latent_dim, dense_layer_sizes, pose_dim):
    """Deterministic init mimicking nn.Linear's U(-1/sqrt(fan_in), 1/sqrt(fan_in))."""
    dims = [latent_dim] + list(dense_layer_sizes) + [pose_dim]
    weights, biases = [], []
    for i in range(len(dims) - 1):
        fan_in, fan_out = dims[i], dims[i + 1]
        key, kw, kb = jax.random.split(key, 3)
        bound = 1.0 / jnp.sqrt(jnp.float32(fan_in))
        w = jax.random.uniform(kw, (fan_in, fan_out), jnp.float32, -bound, bound)
        b = jax.random.uniform(kb, (1, fan_out), jnp.float32, -bound, bound)
        weights.append(w)
        biases.append(b)
    return weights, biases


def generator_reference_f32(x, weights, biases):
    """Pure-JAX f32 reference of the same MLP."""
    h = x
    n = len(weights)
    for i, (w, b) in enumerate(zip(weights, biases)):
        h = h @ w + b
        if i != n - 1:
            h = jnp.maximum(h, 0.0)
    return h


def generator_reference_bf16(x, weights, biases):
    """Reference that mimics the kernel's bf16 quantization points exactly."""
    h = x.astype(jnp.bfloat16).astype(jnp.float32)
    n = len(weights)
    for i, (w, b) in enumerate(zip(weights, biases)):
        wf = w.astype(jnp.bfloat16).astype(jnp.float32)
        h = h @ wf + b
        if i != n - 1:
            h = jnp.maximum(h, 0.0)
            h = h.astype(jnp.bfloat16).astype(jnp.float32)
    return h


if __name__ == "__main__":
    # Shapes consistent with the module:
    #   latent_dim = 8, dense_layer_sizes = [32, 32],
    #   joint_count = 8, joint_dim = 3 -> pose_dim = 24
    latent_dim = 8
    dense_layer_sizes = [32, 32]
    joint_count, joint_dim = 8, 3
    pose_dim = joint_count * joint_dim
    batch = 2

    key = jax.random.PRNGKey(0)
    key, kx = jax.random.split(key)
    x = jax.random.normal(kx, (batch, latent_dim), jnp.float32)

    weights, biases = init_generator_params(key, latent_dim, dense_layer_sizes, pose_dim)

    out = generator_forward(x, weights, biases)
    out = jax.block_until_ready(out)
    assert out.shape == (batch, pose_dim), out.shape

    # Correctness: tight check against a reference with identical bf16
    # quantization points, plus a loose sanity check against pure f32.
    ref_bf16 = generator_reference_bf16(x, weights, biases)
    ref_f32 = generator_reference_f32(x, weights, biases)
    assert jnp.allclose(out, ref_bf16, atol=2e-3, rtol=2e-3), "mismatch vs bf16 reference"
    assert jnp.allclose(out, ref_f32, atol=3e-2, rtol=3e-2), "mismatch vs f32 reference"

    # Also exercise a larger, tile-divisible batch to hit the pipelined path.
    big_batch = 1024
    key, kb = jax.random.split(key)
    xb = jax.random.normal(kb, (big_batch, latent_dim), jnp.float32)
    out_big = jax.block_until_ready(generator_forward(xb, weights, biases))
    ref_big = generator_reference_bf16(xb, weights, biases)
    assert out_big.shape == (big_batch, pose_dim)
    assert jnp.allclose(out_big, ref_big, atol=2e-3, rtol=2e-3), "mismatch (big batch)"

    print("KERNEL_OK")
</pallas_src>

<mosaic_0001>
module attributes {stable_mosaic.version = 11 : i64} {
  func.func @_mlp_kernel(%arg0: i32, %arg1: memref<8x8xbf16, #tpu.memory_space<vmem>>, %arg2: memref<8x128xbf16, #tpu.memory_space<vmem>>, %arg3: memref<1x128xf32, #tpu.memory_space<vmem>>, %arg4: memref<128x128xbf16, #tpu.memory_space<vmem>>, %arg5: memref<1x128xf32, #tpu.memory_space<vmem>>, %arg6: memref<128x24xbf16, #tpu.memory_space<vmem>>, %arg7: memref<1x24xf32, #tpu.memory_space<vmem>>, %arg8: memref<8x24xf32, #tpu.memory_space<vmem>>) attributes {dimension_semantics = [#tpu.dimension_semantics<parallel>], iteration_bounds = array<i64: 1>, scalar_prefetch = 0 : i64, scratch_operands = 0 : i64, tpu.core_type = #tpu.core_type<tc>, window_params = [{transform_indices = @transform_0, window_bounds = array<i64: 8, 8>}, {pipeline_mode = #tpu.pipeline_mode<synchronous>, transform_indices = @transform_1, window_bounds = array<i64: 8, 128>}, {pipeline_mode = #tpu.pipeline_mode<synchronous>, transform_indices = @transform_2, window_bounds = array<i64: 1, 128>}, {pipeline_mode = #tpu.pipeline_mode<synchronous>, transform_indices = @transform_3, window_bounds = array<i64: 128, 128>}, {pipeline_mode = #tpu.pipeline_mode<synchronous>, transform_indices = @transform_4, window_bounds = array<i64: 1, 128>}, {pipeline_mode = #tpu.pipeline_mode<synchronous>, transform_indices = @transform_5, window_bounds = array<i64: 128, 24>}, {pipeline_mode = #tpu.pipeline_mode<synchronous>, transform_indices = @transform_6, window_bounds = array<i64: 1, 24>}, {transform_indices = @transform_7, window_bounds = array<i64: 8, 24>}]} {
    %c0 = arith.constant 0 : index
    %c0_0 = arith.constant 0 : index
    %0 = vector.load %arg1[%c0, %c0_0] : memref<8x8xbf16, #tpu.memory_space<vmem>>, vector<8x8xbf16>
    %c0_1 = arith.constant 0 : index
    %c0_2 = arith.constant 0 : index
    %1 = vector.load %arg2[%c0_1, %c0_2] : memref<8x128xbf16, #tpu.memory_space<vmem>>, vector<8x128xbf16>
    %c0_3 = arith.constant 0 : index
    %c0_4 = arith.constant 0 : index
    %2 = vector.load %arg3[%c0_3, %c0_4] : memref<1x128xf32, #tpu.memory_space<vmem>>, vector<1x128xf32>
    %cst = arith.constant dense<0.000000e+00> : vector<8x128xf32>
    %3 = tpu.matmul %0, %1, %cst {dimension_numbers = #tpu.dot_dimension_numbers<[1], [0], [0], [1], [0, 0, 1, 1], [], []>} : vector<8x8xbf16>, vector<8x128xbf16>, vector<8x128xf32> -> vector<8x128xf32>
    %4 = vector.broadcast %2 : vector<1x128xf32> to vector<8x128xf32>
    %5 = arith.addf %3, %4 : vector<8x128xf32>
    %cst_5 = arith.constant 0.000000e+00 : f32
    %6 = vector.broadcast %cst_5 : f32 to vector<8x128xf32>
    %7 = arith.maximumf %5, %6 : vector<8x128xf32>
    %8 = arith.truncf %7 : vector<8x128xf32> to vector<8x128xbf16>
    %c0_6 = arith.constant 0 : index
    %c0_7 = arith.constant 0 : index
    %9 = vector.load %arg4[%c0_6, %c0_7] : memref<128x128xbf16, #tpu.memory_space<vmem>>, vector<128x128xbf16>
    %c0_8 = arith.constant 0 : index
    %c0_9 = arith.constant 0 : index
    %10 = vector.load %arg5[%c0_8, %c0_9] : memref<1x128xf32, #tpu.memory_space<vmem>>, vector<1x128xf32>
    %cst_10 = arith.constant dense<0.000000e+00> : vector<8x128xf32>
    %11 = tpu.matmul %8, %9, %cst_10 {dimension_numbers = #tpu.dot_dimension_numbers<[1], [0], [0], [1], [0, 0, 1, 1], [], []>} : vector<8x128xbf16>, vector<128x128xbf16>, vector<8x128xf32> -> vector<8x128xf32>
    %12 = vector.broadcast %10 : vector<1x128xf32> to vector<8x128xf32>
    %13 = arith.addf %11, %12 : vector<8x128xf32>
    %cst_11 = arith.constant 0.000000e+00 : f32
    %14 = vector.broadcast %cst_11 : f32 to vector<8x128xf32>
    %15 = arith.maximumf %13, %14 : vector<8x128xf32>
    %16 = arith.truncf %15 : vector<8x128xf32> to vector<8x128xbf16>
    %c0_12 = arith.constant 0 : index
    %c0_13 = arith.constant 0 : index
    %17 = vector.load %arg6[%c0_12, %c0_13] : memref<128x24xbf16, #tpu.memory_space<vmem>>, vector<128x24xbf16>
    %c0_14 = arith.constant 0 : index
    %c0_15 = arith.constant 0 : index
    %18 = vector.load %arg7[%c0_14, %c0_15] : memref<1x24xf32, #tpu.memory_space<vmem>>, vector<1x24xf32>
    %cst_16 = arith.constant dense<0.000000e+00> : vector<8x24xf32>
    %19 = tpu.matmul %16, %17, %cst_16 {dimension_numbers = #tpu.dot_dimension_numbers<[1], [0], [0], [1], [0, 0, 1, 1], [], []>} : vector<8x128xbf16>, vector<128x24xbf16>, vector<8x24xf32> -> vector<8x24xf32>
    %20 = vector.broadcast %18 : vector<1x24xf32> to vector<8x24xf32>
    %21 = arith.addf %19, %20 : vector<8x24xf32>
    %c0_17 = arith.constant 0 : index
    %c0_18 = arith.constant 0 : index
    %22 = vector.load %arg8[%c0_17, %c0_18] : memref<8x24xf32, #tpu.memory_space<vmem>>, vector<8x24xf32>
    tpu.vector_store %arg8[%c0_17, %c0_18], %21 {strides = array<i32>} : memref<8x24xf32, #tpu.memory_space<vmem>>, vector<8x24xf32>,
    return
  }
  func.func @transform_0(%arg0: i32) -> (i32, i32) {
    %c0_i32 = arith.constant 0 : i32
    %c0_i32_0 = arith.constant 0 : i32
    return %arg0, %c0_i32 : i32, i32
  }
  func.func @transform_1(%arg0: i32) -> (i32, i32) {
    %c0_i32 = arith.constant 0 : i32
    %c0_i32_0 = arith.constant 0 : i32
    %c0_i32_1 = arith.constant 0 : i32
    return %c0_i32, %c0_i32_0 : i32, i32
  }
  func.func @transform_2(%arg0: i32) -> (i32, i32) {
    %c0_i32 = arith.constant 0 : i32
    %c0_i32_0 = arith.constant 0 : i32
    %c0_i32_1 = arith.constant 0 : i32
    return %c0_i32, %c0_i32_0 : i32, i32
  }
  func.func @transform_3(%arg0: i32) -> (i32, i32) {
    %c0_i32 = arith.constant 0 : i32
    %c0_i32_0 = arith.constant 0 : i32
    %c0_i32_1 = arith.constant 0 : i32
    return %c0_i32, %c0_i32_0 : i32, i32
  }
  func.func @transform_4(%arg0: i32) -> (i32, i32) {
    %c0_i32 = arith.constant 0 : i32
    %c0_i32_0 = arith.constant 0 : i32
    %c0_i32_1 = arith.constant 0 : i32
    return %c0_i32, %c0_i32_0 : i32, i32
  }
  func.func @transform_5(%arg0: i32) -> (i32, i32) {
    %c0_i32 = arith.constant 0 : i32
    %c0_i32_0 = arith.constant 0 : i32
    %c0_i32_1 = arith.constant 0 : i32
    return %c0_i32, %c0_i32_0 : i32, i32
  }
  func.func @transform_6(%arg0: i32) -> (i32, i32) {
    %c0_i32 = arith.constant 0 : i32
    %c0_i32_0 = arith.constant 0 : i32
    %c0_i32_1 = arith.constant 0 : i32
    return %c0_i32, %c0_i32_0 : i32, i32
  }
  func.func @transform_7(%arg0: i32) -> (i32, i32) {
    %c0_i32 = arith.constant 0 : i32
    %c0_i32_0 = arith.constant 0 : i32
    return %arg0, %c0_i32 : i32, i32
  }
}

</mosaic_0001>

<llo_original>
// kernel: tpu_custom_call.1
$region0: #{tpu_custom_call.1}
  #allocation0 [shape = 'u32[]', space=smem, size = 0x4, offset = 0x4, fixed_abs, tag = 'smem constant byte address 0x4 - core index']
  #allocation1 [shape = 'u32[144,128]{1,0:T(1,128)}', space=vmem, size = 0x12000, scoped, tag = 'internal scratch']
  %s0 = inlined_call_operand.vmem [shape: bf16[8,8], index: 0, kind: input, shape index: {}]
  %s1 = inlined_call_operand.vmem [shape: bf16[8,128], index: 1, kind: input, shape index: {}]
  %s2 = inlined_call_operand.vmem [shape: f32[1,128], index: 2, kind: input, shape index: {}]
  %s3 = inlined_call_operand.vmem [shape: bf16[128,128], index: 3, kind: input, shape index: {}]
  %s4 = inlined_call_operand.vmem [shape: f32[1,128], index: 4, kind: input, shape index: {}]
  %s5 = inlined_call_operand.vmem [shape: bf16[128,24], index: 5, kind: input, shape index: {}]
  %s6 = inlined_call_operand.vmem [shape: f32[1,24], index: 6, kind: input, shape index: {}]
  %s7 = inlined_call_operand.hbm [shape: f32[8,24], index: 7, kind: output, shape index: {}]
  %s8 = sld [smem:[#allocation0]]
  $region38: #{tpu_custom_call.1} parent=0
    _
  %s10 = ssub.s32 1, %s8
  %s11 = scalar_select 0, %s10, %s8
  $region1: #{tpu_custom_call.1} parent=0
    #allocation2 [shape = 'u8[4096]{0}', space=vmem, size = 0x1000, scoped, tag = 'output window, operand 0, single buffered']
    #allocation3 [shape = 's32[1]{0}', space=sflag, size = 0x4, scoped, tag = 'scoped memory for tpu_custom_call.1']
    %12 = vsyncpa [#allocation3], 0
    // Predicated region
    $region2: #{tpu_custom_call.1} parent=1 // pred_check
      _
    $region3: #{tpu_custom_call.1} parent=1 // pred_check_branch
      %14 = sbr.rel (0) target = $region5
    $region4: #{tpu_custom_call.1} parent=1 // pred_region
      _
    $region5: #{tpu_custom_call.1} parent=1 // pred_fallthru
      _
    // Predicated region
    $region6: #{tpu_custom_call.1} parent=1 // pred_check
      _
    $region7: #{tpu_custom_call.1} parent=1 // pred_check_branch
      %16 = sbr.rel (0) target = $region9
    $region8: #{tpu_custom_call.1} parent=1 // pred_region
      _
    $region9: #{tpu_custom_call.1} parent=1 // pred_fallthru
      _
    // Predicated region
    $region10: #{tpu_custom_call.1} parent=1 // pred_check
      _
    $region11: #{tpu_custom_call.1} parent=1 // pred_check_branch
      %18 = sbr.rel (0) target = $region13
    $region12: #{tpu_custom_call.1} parent=1 // pred_region
      _
    $region13: #{tpu_custom_call.1} parent=1 // pred_fallthru
      _
    // Predicated region
    $region14: #{tpu_custom_call.1} parent=1 // pred_check
      _
    $region15: #{tpu_custom_call.1} parent=1 // pred_check_branch
      %20 = sbr.rel (0) target = $region17
    $region16: #{tpu_custom_call.1} parent=1 // pred_region
      _
    $region17: #{tpu_custom_call.1} parent=1 // pred_fallthru
      _
    // Predicated region
    $region18: #{tpu_custom_call.1} parent=1 // pred_check
      _
    $region19: #{tpu_custom_call.1} parent=1 // pred_check_branch
      %22 = sbr.rel (0) target = $region21
    $region20: #{tpu_custom_call.1} parent=1 // pred_region
      _
    $region21: #{tpu_custom_call.1} parent=1 // pred_fallthru
      _
    // Predicated region
    $region22: #{tpu_custom_call.1} parent=1 // pred_check
      _
    $region23: #{tpu_custom_call.1} parent=1 // pred_check_branch
      %24 = sbr.rel (0) target = $region25
    $region24: #{tpu_custom_call.1} parent=1 // pred_region
      _
    $region25: #{tpu_custom_call.1} parent=1 // pred_fallthru
      _
    // Predicated region
    $region26: #{tpu_custom_call.1} parent=1 // pred_check
      _
    $region27: #{tpu_custom_call.1} parent=1 // pred_check_branch
      %26 = sbr.rel (0) target = $region29
    $region28: #{tpu_custom_call.1} parent=1 // pred_region
      _
    $region29: #{tpu_custom_call.1} parent=1 // pred_fallthru
      _
    %v28 = vld [vmem:[%s0] sm:$0xf]
    %v29 = vld [vmem:[%s1] sm:$0xf]
    %v30 = vld [vmem:[%s2] sm:$0x1]
    %v32 = vlaneseq
    %v33 = vshrl.u32 %v32, 7
    %v34 = vsub.s32 0, %v33
    %v35 = vrot.slane %v30, %v34
    %vm37 = vcmask 64512
    %v39 = vsel %vm37, %v28, 0
    %vm41 = vcmask 1043456
    %v43 = vsel %vm41, %v29, 0
    %45 = vmatprep.subr.bf16.mxu0 0
    %46 = vmatpush1.bf16.msra.mxu0 0
    %47 = vmatprep.subr.bf16.mxu0 0
    %48 = vmatpush1.bf16.msra.mxu0 0
    %49 = vmatprep.subr.bf16.mxu0 0
    %50 = vmatpush1.bf16.msra.mxu0 0
    %51 = vmatprep.subr.bf16.mxu0 0
    %52 = vmatpush1.bf16.msra.mxu0 0
    %53 = vmatprep.subr.bf16.mxu0 0
    %54 = vmatpush1.bf16.msra.mxu0 0
    %55 = vmatprep.subr.bf16.mxu0 0
    %56 = vmatpush1.bf16.msra.mxu0 0
    %57 = vmatprep.subr.bf16.mxu0 0
    %58 = vmatpush1.bf16.msra.mxu0 0
    %59 = vmatprep.subr.bf16.mxu0 0
    %60 = vmatpush1.bf16.msra.mxu0 %v43
    %61 = vmatprep.subr.bf16.mxu0 0
    %62 = vmatpush2.bf16.msra.mxu0 0
    %63 = vmatprep.subr.bf16.mxu0 0
    %64 = vmatpush2.bf16.msra.mxu0 0
    %65 = vmatprep.subr.bf16.mxu0 0
    %66 = vmatpush2.bf16.msra.mxu0 0
    %67 = vmatprep.subr.bf16.mxu0 0
    %68 = vmatpush2.bf16.msra.mxu0 0
    %69 = vmatprep.subr.bf16.mxu0 0
    %70 = vmatpush2.bf16.msra.mxu0 0
    %71 = vmatprep.subr.bf16.mxu0 0
    %72 = vmatpush2.bf16.msra.mxu0 0
    %73 = vmatprep.subr.bf16.mxu0 0
    %74 = vmatpush2.bf16.msra.mxu0 0
    %75 = vmatprep.subr.bf16.mxu0 0
    %76 = vmatpush2.bf16.msra.mxu0 0
    %77 = vmatprep.mubr.bf16.mxu0 0
    %78 = vmatmul.mubr.bf16.gmra.mxu0 %v39
    %v79 = vpop.f32.mrf.mxu0
    %v80 = vadd.f32 %v35, %v79
    %v81 = vpop.f32.mrf.mxu0
    %v82 = vpop.f32.mrf.mxu0
    %v83 = vpop.f32.mrf.mxu0
    %84 = vdwg.mxu0
    %v85 = vmax.f32 %v80, 0.0
    %v86 = vpack.c.bf16 %v85, %v85
    %v87 = vld [vmem:[%s3] sm:$0xf]
    %v88 = vld [vmem:[%s3 + $0x4] sm:$0xf]
    %v89 = vld [vmem:[%s3 + $0x8] sm:$0xf]
    %v90 = vld [vmem:[%s3 + $0xc] sm:$0xf]
    %v91 = vld [vmem:[%s3 + $0x10] sm:$0xf]
    %v92 = vld [vmem:[%s3 + $0x14] sm:$0xf]
    %v93 = vld [vmem:[%s3 + $0x18] sm:$0xf]
    %v94 = vld [vmem:[%s3 + $0x1c] sm:$0xf]
    %v95 = vld [vmem:[%s3 + $0x20] sm:$0xf]
    %v96 = vld [vmem:[%s3 + $0x24] sm:$0xf]
    %v97 = vld [vmem:[%s3 + $0x28] sm:$0xf]
    %v98 = vld [vmem:[%s3 + $0x2c] sm:$0xf]
    %v99 = vld [vmem:[%s3 + $0x30] sm:$0xf]
    %v100 = vld [vmem:[%s3 + $0x34] sm:$0xf]
    %v101 = vld [vmem:[%s3 + $0x38] sm:$0xf]
    %v102 = vld [vmem:[%s3 + $0x3c] sm:$0xf]
    %v103 = vld [vmem:[%s4] sm:$0x1]
    %v105 = vlaneseq
    %v106 = vshrl.u32 %v105, 7
    %v107 = vsub.s32 0, %v106
    %v108 = vrot.slane %v103, %v107
    %v126 = vunpack.c.l.b16 %v87
    %v127 = vunpack.c.l.b16 %v88
    %v128 = vunpack.c.l.b16 %v89
    %v129 = vunpack.c.l.b16 %v90
    %v130 = vunpack.c.l.b16 %v91
    %v131 = vunpack.c.l.b16 %v92
    %v132 = vunpack.c.l.b16 %v93
    %v133 = vunpack.c.l.b16 %v94
    %v134 = vunpack.c.l.b16 %v95
    %v135 = vunpack.c.l.b16 %v96
    %v136 = vunpack.c.l.b16 %v97
    %v137 = vunpack.c.l.b16 %v98
    %v138 = vunpack.c.l.b16 %v99
    %v139 = vunpack.c.l.b16 %v100
    %v140 = vunpack.c.l.b16 %v101
    %v141 = vunpack.c.l.b16 %v102
    %v142 = vpack.c.b16 %v127, %v126
    %v143 = vpack.c.b16 %v129, %v128
    %v144 = vpack.c.b16 %v131, %v130
    %v145 = vpack.c.b16 %v133, %v132
    %v146 = vpack.c.b16 %v135, %v134
    %v147 = vpack.c.b16 %v137, %v136
    %v148 = vpack.c.b16 %v139, %v138
    %v149 = vpack.c.b16 %v141, %v140
    %158 = vmatprep.subr.bf16.mxu0 0
    %159 = vmatpush1.bf16.msra.mxu0 %v149
    %160 = vmatprep.subr.bf16.mxu0 0
    %161 = vmatpush1.bf16.msra.mxu0 %v148
    %162 = vmatprep.subr.bf16.mxu0 0
    %163 = vmatpush1.bf16.msra.mxu0 %v147
    %164 = vmatprep.subr.bf16.mxu0 0
    %165 = vmatpush1.bf16.msra.mxu0 %v146
    %166 = vmatprep.subr.bf16.mxu0 0
    %167 = vmatpush1.bf16.msra.mxu0 %v145
    %168 = vmatprep.subr.bf16.mxu0 0
    %169 = vmatpush1.bf16.msra.mxu0 %v144
    %170 = vmatprep.subr.bf16.mxu0 0
    %171 = vmatpush1.bf16.msra.mxu0 %v143
    %172 = vmatprep.subr.bf16.mxu0 0
    %173 = vmatpush1.bf16.msra.mxu0 %v142
    %174 = vmatprep.subr.bf16.mxu0 0
    %175 = vmatpush2.bf16.msra.mxu0 0
    %176 = vmatprep.subr.bf16.mxu0 0
    %177 = vmatpush2.bf16.msra.mxu0 0
    %178 = vmatprep.subr.bf16.mxu0 0
    %179 = vmatpush2.bf16.msra.mxu0 0
    %180 = vmatprep.subr.bf16.mxu0 0
    %181 = vmatpush2.bf16.msra.mxu0 0
    %182 = vmatprep.subr.bf16.mxu0 0
    %183 = vmatpush2.bf16.msra.mxu0 0
    %184 = vmatprep.subr.bf16.mxu0 0
    %185 = vmatpush2.bf16.msra.mxu0 0
    %186 = vmatprep.subr.bf16.mxu0 0
    %187 = vmatpush2.bf16.msra.mxu0 0
    %188 = vmatprep.subr.bf16.mxu0 0
    %189 = vmatpush2.bf16.msra.mxu0 0
    %190 = vmatprep.mubr.bf16.mxu0 0
    %191 = vmatmul.mubr.bf16.gmra.mxu0 %v86
    %v192 = vpop.f32.mrf.mxu0
    %v193 = vadd.f32 %v108, %v192
    %v194 = vpop.f32.mrf.mxu0
    %v195 = vpop.f32.mrf.mxu0
    %v196 = vpop.f32.mrf.mxu0
    %197 = vdwg.mxu0
    %v198 = vmax.f32 %v193, 0.0
    %v199 = vpack.c.bf16 %v198, %v198
    %v200 = vld [vmem:[%s5] sm:$0xf]
    %v201 = vld [vmem:[%s5 + $0x4] sm:$0xf]
    %v202 = vld [vmem:[%s5 + $0x8] sm:$0xf]
    %v203 = vld [vmem:[%s5 + $0xc] sm:$0xf]
    %v204 = vld [vmem:[%s5 + $0x10] sm:$0xf]
    %v205 = vld [vmem:[%s5 + $0x14] sm:$0xf]
    %v206 = vld [vmem:[%s5 + $0x18] sm:$0xf]
    %v207 = vld [vmem:[%s5 + $0x1c] sm:$0xf]
    %v208 = vld [vmem:[%s5 + $0x20] sm:$0xf]
    %v209 = vld [vmem:[%s5 + $0x24] sm:$0xf]
    %v210 = vld [vmem:[%s5 + $0x28] sm:$0xf]
    %v211 = vld [vmem:[%s5 + $0x2c] sm:$0xf]
    %v212 = vld [vmem:[%s5 + $0x30] sm:$0xf]
    %v213 = vld [vmem:[%s5 + $0x34] sm:$0xf]
    %v214 = vld [vmem:[%s5 + $0x38] sm:$0xf]
    %v215 = vld [vmem:[%s5 + $0x3c] sm:$0xf]
    %v216 = vld [vmem:[%s6] sm:$0x1]
    %v218 = vlaneseq
    %v219 = vshrl.u32 %v218, 7
    %v220 = vsub.s32 0, %v219
    %v221 = vrot.slane %v216, %v220
    %v239 = vunpack.c.l.b16 %v200
    %v240 = vunpack.c.l.b16 %v201
    %v241 = vunpack.c.l.b16 %v202
    %v242 = vunpack.c.l.b16 %v203
    %v243 = vunpack.c.l.b16 %v204
    %v244 = vunpack.c.l.b16 %v205
    %v245 = vunpack.c.l.b16 %v206
    %v246 = vunpack.c.l.b16 %v207
    %v247 = vunpack.c.l.b16 %v208
    %v248 = vunpack.c.l.b16 %v209
    %v249 = vunpack.c.l.b16 %v210
    %v250 = vunpack.c.l.b16 %v211
    %v251 = vunpack.c.l.b16 %v212
    %v252 = vunpack.c.l.b16 %v213
    %v253 = vunpack.c.l.b16 %v214
    %v254 = vunpack.c.l.b16 %v215
    %v255 = vpack.c.b16 %v240, %v239
    %v256 = vpack.c.b16 %v242, %v241
    %v257 = vpack.c.b16 %v244, %v243
    %v258 = vpack.c.b16 %v246, %v245
    %v259 = vpack.c.b16 %v248, %v247
    %v260 = vpack.c.b16 %v250, %v249
    %v261 = vpack.c.b16 %v252, %v251
    %v262 = vpack.c.b16 %v254, %v253
    %271 = vmatprep.subr.bf16.mxu0 0
    %272 = vmatpush1.bf16.msra.mxu0 %v262
    %273 = vmatprep.subr.bf16.mxu0 0
    %274 = vmatpush1.bf16.msra.mxu0 %v261
    %275 = vmatprep.subr.bf16.mxu0 0
    %276 = vmatpush1.bf16.msra.mxu0 %v260
    %277 = vmatprep.subr.bf16.mxu0 0
    %278 = vmatpush1.bf16.msra.mxu0 %v259
    %279 = vmatprep.subr.bf16.mxu0 0
    %280 = vmatpush1.bf16.msra.mxu0 %v258
    %281 = vmatprep.subr.bf16.mxu0 0
    %282 = vmatpush1.bf16.msra.mxu0 %v257
    %283 = vmatprep.subr.bf16.mxu0 0
    %284 = vmatpush1.bf16.msra.mxu0 %v256
    %285 = vmatprep.subr.bf16.mxu0 0
    %286 = vmatpush1.bf16.msra.mxu0 %v255
    %287 = vmatprep.subr.bf16.mxu0 0
    %288 = vmatpush2.bf16.msra.mxu0 0
    %289 = vmatprep.subr.bf16.mxu0 0
    %290 = vmatpush2.bf16.msra.mxu0 0
    %291 = vmatprep.subr.bf16.mxu0 0
    %292 = vmatpush2.bf16.msra.mxu0 0
    %293 = vmatprep.subr.bf16.mxu0 0
    %294 = vmatpush2.bf16.msra.mxu0 0
    %295 = vmatprep.subr.bf16.mxu0 0
    %296 = vmatpush2.bf16.msra.mxu0 0
    %297 = vmatprep.subr.bf16.mxu0 0
    %298 = vmatpush2.bf16.msra.mxu0 0
    %299 = vmatprep.subr.bf16.mxu0 0
    %300 = vmatpush2.bf16.msra.mxu0 0
    %301 = vmatprep.subr.bf16.mxu0 0
    %302 = vmatpush2.bf16.msra.mxu0 0
    %303 = vmatprep.mubr.bf16.mxu0 0
    %304 = vmatmul.mubr.bf16.gmra.mxu0 %v199
    %v305 = vpop.f32.mrf.mxu0
    %v306 = vadd.f32 %v221, %v305
    %v307 = vpop.f32.mrf.mxu0
    %v308 = vpop.f32.mrf.mxu0
    %v309 = vpop.f32.mrf.mxu0
    %310 = vdwg.mxu0
    %vm311 = vcmask 195584
    %312 = vst.msk [vmem:[#allocation2] sm:$0xff] %vm311, %v306
    // Predicated region
    $region30: #{tpu_custom_call.1} parent=1 // pred_check
      _
    $region31: #{tpu_custom_call.1} parent=1 // pred_check_branch
      %314 = sbr.rel (0) target = $region33
    $region32: #{tpu_custom_call.1} parent=1 // pred_region
      %s316 = ssub.s32 128, 128
      %317 = vsyncadd [#allocation3], %s316
      %s319 = sshll.u32 [#allocation2], 4
      %s320 = int_to_ptr.vmem [resolvable:$true] %s319
      %322 = dma.vmem_to_hbm [thread:$0]  %s320, 128, %s7, [#allocation3]
    $region33: #{tpu_custom_call.1} parent=1 // pred_fallthru
      _
    // Predicated region
    $region34: #{tpu_custom_call.1} parent=1 // pred_check
      _
    $region35: #{tpu_custom_call.1} parent=1 // pred_check_branch
      %324 = sbr.rel (0) target = $region37
    $region36: #{tpu_custom_call.1} parent=1 // pred_region
      %325 = dma.done [#allocation3], 128
    $region37: #{tpu_custom_call.1} parent=1 // pred_fallthru
      _
    %326 = vsyncpa [#allocation3], 1

</llo_original>
